<compile_context>
chip_gen: v5e
topology: v5e:2x2
jax: 0.10.0
libtpu: 0.0.40
codegen_flags: <defaults>
</compile_context>

<pallas_src>
import jax
import jax.numpy as jnp
from jax.experimental import pallas as pl
from jax.experimental.pallas import tpu as pltpu

# ---- static problem sizes (small, consistent with a conv feature extractor) ----
N, C_IN, H, W = 2, 4, 16, 16
C_OUT = 8
KH = KW = 3
K_FLAT = KH * KW * C_IN   # 36  (im2col contraction dim)
HW = H * W                # 256 (lane-dense per-image output dim, multiple of 128)


def conv_im2col_kernel(p_ref, w_ref, b_ref, o_ref):
    """Whole working set (<100 KiB) lives in VMEM; single invocation, no grid.

    p_ref: (K_FLAT, N*HW) bf16  im2col patches, batch fused into lanes
    w_ref: (C_OUT, K_FLAT) bf16 flattened conv weights
    b_ref: (C_OUT, 1)      f32  bias
    o_ref: (N, C_OUT, HW)  f32  NCHW-flattened output
    """
    # One fused (8,36)x(36,512) MXU matmul, f32 accumulation.
    acc = jnp.dot(w_ref[...], p_ref[...], preferred_element_type=jnp.float32)  # (8, 512)
    # Single f32 bias broadcast + ReLU on the VPU.
    y = jnp.maximum(acc + b_ref[...], 0.0)
    # Two unmasked 256-lane stores (lane offsets 0 and 256, both multiples of 128).
    for n in range(N):  # static unroll, N=2
        o_ref[n] = y[:, n * HW:(n + 1) * HW]


@jax.jit
def feature_extractor_forward(image_nchw, weight_hwio, bias):
    """image_nchw: (N, C_IN, H, W) f32 -> (N, C_OUT, H, W) f32 (NCHW, like PyTorch)."""
    # --- im2col at trace time: pad + 9 slices + stack.  allow_input_fusion below
    #     lets XLA fuse this producer into the pallas call (no HBM round-trip). ---
    x_pad = jnp.pad(image_nchw, ((0, 0), (0, 0), (1, 1), (1, 1)))      # (N, C_IN, H+2, W+2)
    taps = jnp.stack(
        [x_pad[:, :, dh:dh + H, dw:dw + W] for dh in range(KH) for dw in range(KW)],
        axis=0,
    )                                                                  # (9, N, C_IN, H, W)
    # Row index k = (dh*KW + dw)*C_IN + c ; column index = n*HW + h*W + w.
    patches = (
        taps.transpose(0, 2, 1, 3, 4)                                  # (9, C_IN, N, H, W)
        .reshape(K_FLAT, N * HW)                                       # (36, 512)
        .astype(jnp.bfloat16)
    )

    # (KH, KW, C_IN, C_OUT) -> (C_OUT, KH*KW*C_IN); flat index (dh*KW+dw)*C_IN + c
    # matches the patches' k index exactly.
    w_flat = (
        jnp.transpose(weight_hwio, (3, 0, 1, 2))
        .reshape(C_OUT, K_FLAT)
        .astype(jnp.bfloat16)
    )
    b2 = bias.reshape(C_OUT, 1).astype(jnp.float32)

    out_flat = pl.pallas_call(
        conv_im2col_kernel,
        out_shape=jax.ShapeDtypeStruct((N, C_OUT, HW), jnp.float32),
        in_specs=[
            pl.BlockSpec(memory_space=pltpu.MemorySpace.VMEM),   # patches (36, 512)
            pl.BlockSpec(memory_space=pltpu.MemorySpace.VMEM),   # weights (8, 36)
            pl.BlockSpec(memory_space=pltpu.MemorySpace.VMEM),   # bias    (8, 1)
        ],
        out_specs=pl.BlockSpec(memory_space=pltpu.MemorySpace.VMEM),
        compiler_params=pltpu.CompilerParams(
            # Let XLA fuse the im2col / reshape / cast producers directly into
            # the kernel's operands instead of materializing them to HBM.
            allow_input_fusion=[True, True, True],
        ),
    )(patches, w_flat, b2)

    # Output is already NCHW-flattened; this reshape moves no data.
    return out_flat.reshape(N, C_OUT, H, W)


def _reference_bf16(image_nchw, weight_hwio, bias):
    """lax conv with the same bf16-in / f32-accumulate math as the kernel."""
    y = jax.lax.conv_general_dilated(
        image_nchw.astype(jnp.bfloat16), weight_hwio.astype(jnp.bfloat16),
        window_strides=(1, 1), padding="SAME",
        dimension_numbers=("NCHW", "HWIO", "NCHW"),
        preferred_element_type=jnp.float32,
    )
    return jnp.maximum(y + bias.reshape(1, C_OUT, 1, 1), 0.0)


def _reference_f32(image_nchw, weight_hwio, bias):
    """Full-f32 reference (loose sanity check on the bf16 input cast)."""
    y = jax.lax.conv_general_dilated(
        image_nchw, weight_hwio, window_strides=(1, 1), padding="SAME",
        dimension_numbers=("NCHW", "HWIO", "NCHW"),
    )
    return jnp.maximum(y + bias.reshape(1, C_OUT, 1, 1), 0.0)


if __name__ == "__main__":
    key = jax.random.PRNGKey(0)
    k_img, k_w, k_b = jax.random.split(key, 3)

    image = jax.random.normal(k_img, (N, C_IN, H, W), dtype=jnp.float32)
    fan_in = KH * KW * C_IN
    weight = jax.random.normal(k_w, (KH, KW, C_IN, C_OUT), dtype=jnp.float32) * (
        2.0 / fan_in
    ) ** 0.5
    bias = jax.random.normal(k_b, (C_OUT,), dtype=jnp.float32) * 0.01

    out = jax.block_until_ready(feature_extractor_forward(image, weight, bias))
    assert out.shape == (N, C_OUT, H, W)

    # Check against a reference using identical bf16-input / f32-acc math
    # (tolerance 1e-3: MXU vs XLA-conv accumulation order may differ slightly).
    ref_bf16 = jax.block_until_ready(_reference_bf16(image, weight, bias))
    assert jnp.allclose(out, ref_bf16, atol=1e-3, rtol=1e-3), float(
        jnp.max(jnp.abs(out - ref_bf16))
    )
    # Loose sanity check against the pure-f32 conv (bf16 rounding of inputs only).
    ref_f32 = jax.block_until_ready(_reference_f32(image, weight, bias))
    assert jnp.allclose(out, ref_f32, atol=1e-1, rtol=1e-1), float(
        jnp.max(jnp.abs(out - ref_f32))
    )

    print("KERNEL_OK")
</pallas_src>

<mosaic_0001>
module attributes {stable_mosaic.version = 11 : i64} {
  func.func @conv_im2col_kernel(%arg0: memref<36x512xbf16, #tpu.memory_space<vmem>>, %arg1: memref<8x36xbf16, #tpu.memory_space<vmem>>, %arg2: memref<8x1xf32, #tpu.memory_space<vmem>>, %arg3: memref<2x8x256xf32, #tpu.memory_space<vmem>>) attributes {dimension_semantics = [], scalar_prefetch = 0 : i64, scratch_operands = 0 : i64, tpu.core_type = #tpu.core_type<tc>} {
    %c0 = arith.constant 0 : index
    %c0_0 = arith.constant 0 : index
    %0 = vector.load %arg1[%c0, %c0_0] : memref<8x36xbf16, #tpu.memory_space<vmem>>, vector<8x36xbf16>
    %c0_1 = arith.constant 0 : index
    %c0_2 = arith.constant 0 : index
    %1 = vector.load %arg0[%c0_1, %c0_2] : memref<36x512xbf16, #tpu.memory_space<vmem>>, vector<36x512xbf16>
    %cst = arith.constant dense<0.000000e+00> : vector<8x512xf32>
    %2 = tpu.matmul %0, %1, %cst {dimension_numbers = #tpu.dot_dimension_numbers<[1], [0], [0], [1], [0, 0, 1, 1], [], []>} : vector<8x36xbf16>, vector<36x512xbf16>, vector<8x512xf32> -> vector<8x512xf32>
    %c0_3 = arith.constant 0 : index
    %c0_4 = arith.constant 0 : index
    %3 = vector.load %arg2[%c0_3, %c0_4] : memref<8x1xf32, #tpu.memory_space<vmem>>, vector<8x1xf32>
    %4 = vector.broadcast %3 : vector<8x1xf32> to vector<8x512xf32>
    %5 = arith.addf %2, %4 : vector<8x512xf32>
    %cst_5 = arith.constant 0.000000e+00 : f32
    %6 = vector.broadcast %cst_5 : f32 to vector<8x512xf32>
    %7 = arith.maximumf %5, %6 : vector<8x512xf32>
    %8 = vector.extract_strided_slice %7 {offsets = [0, 0], sizes = [8, 256], strides = [1, 1]} : vector<8x512xf32> to vector<8x256xf32>
    %c0_6 = arith.constant 0 : index
    %c0_7 = arith.constant 0 : index
    %c0_8 = arith.constant 0 : index
    %9 = vector.load %arg3[%c0_6, %c0_7, %c0_8] : memref<2x8x256xf32, #tpu.memory_space<vmem>>, vector<1x8x256xf32>
    %10 = vector.shape_cast %9 : vector<1x8x256xf32> to vector<8x256xf32>
    %11 = vector.shape_cast %8 : vector<8x256xf32> to vector<1x8x256xf32>
    tpu.vector_store %arg3[%c0_6, %c0_7, %c0_8], %11 {strides = array<i32>} : memref<2x8x256xf32, #tpu.memory_space<vmem>>, vector<1x8x256xf32>,
    %12 = vector.extract_strided_slice %7 {offsets = [0, 256], sizes = [8, 256], strides = [1, 1]} : vector<8x512xf32> to vector<8x256xf32>
    %c1 = arith.constant 1 : index
    %c0_9 = arith.constant 0 : index
    %c0_10 = arith.constant 0 : index
    %13 = vector.load %arg3[%c1, %c0_9, %c0_10] : memref<2x8x256xf32, #tpu.memory_space<vmem>>, vector<1x8x256xf32>
    %14 = vector.shape_cast %13 : vector<1x8x256xf32> to vector<8x256xf32>
    %15 = vector.shape_cast %12 : vector<8x256xf32> to vector<1x8x256xf32>
    tpu.vector_store %arg3[%c1, %c0_9, %c0_10], %15 {strides = array<i32>} : memref<2x8x256xf32, #tpu.memory_space<vmem>>, vector<1x8x256xf32>,
    return
  }
}

</mosaic_0001>

<llo_original>
// kernel: feature_extractor_forward.1
$region0: #{feature_extractor_forward.1}
  #allocation0 [shape = 'u32[]', space=smem, size = 0x4, offset = 0x4, fixed_abs, tag = 'smem constant byte address 0x4 - core index']
  #allocation1 [shape = 'u32[72,128]{1,0:T(1,128)}', space=vmem, size = 0x9000, scoped, tag = 'internal scratch']
  %s0 = inlined_call_operand.vmem [shape: bf16[36,512], index: 0, kind: input, shape index: {}]
  %s1 = inlined_call_operand.vmem [shape: bf16[8,36], index: 1, kind: input, shape index: {}]
  %s2 = inlined_call_operand.vmem [shape: f32[8,1], index: 2, kind: input, shape index: {}]
  %s3 = inlined_call_operand.vmem [shape: f32[2,8,256], index: 3, kind: output, shape index: {}]
  %s4 = sld [smem:[#allocation0]]
  $region22: #{feature_extractor_forward.1} parent=0
    _
  %s6 = ssub.s32 1, %s4
  %s7 = scalar_select 0, %s6, %s4
  // Predicated region
  $region2: #{feature_extractor_forward.1} parent=0 // pred_check
    _
  $region3: #{feature_extractor_forward.1} parent=0 // pred_check_branch
    %9 = sbr.rel (0) target = $region5
  $region4: #{feature_extractor_forward.1} parent=0 // pred_region
    _
  $region5: #{feature_extractor_forward.1} parent=0 // pred_fallthru
    _
  // Predicated region
  $region6: #{feature_extractor_forward.1} parent=0 // pred_check
    _
  $region7: #{feature_extractor_forward.1} parent=0 // pred_check_branch
    %11 = sbr.rel (0) target = $region9
  $region8: #{feature_extractor_forward.1} parent=0 // pred_region
    _
  $region9: #{feature_extractor_forward.1} parent=0 // pred_fallthru
    _
  // Predicated region
  $region10: #{feature_extractor_forward.1} parent=0 // pred_check
    _
  $region11: #{feature_extractor_forward.1} parent=0 // pred_check_branch
    %13 = sbr.rel (0) target = $region13
  $region12: #{feature_extractor_forward.1} parent=0 // pred_region
    _
  $region13: #{feature_extractor_forward.1} parent=0 // pred_fallthru
    _
  %v15 = vld [vmem:[%s1] sm:$0xf]
  %v16 = vld [vmem:[%s0] sm:$0xff]
  %v17 = vld [vmem:[%s0 + $0x8] sm:$0xff]
  %v18 = vld [vmem:[%s0 + $0x10] sm:$0xff]
  %v19 = vld [vmem:[%s0 + $0x18] sm:$0xff]
  %v20 = vld [vmem:[%s0 + $0x20] sm:$0xff]
  %v21 = vld [vmem:[%s0 + $0x28] sm:$0xff]
  %v22 = vld [vmem:[%s0 + $0x30] sm:$0xff]
  %v23 = vld [vmem:[%s0 + $0x38] sm:$0xff]
  %v24 = vld [vmem:[%s0 + $0x40] sm:$0x33]
  %v25 = vld [vmem:[%s0 + $0x48] sm:$0x33]
  %v26 = vld [vmem:[%s2] sm:$0xff]
  %28 = vset.pattern.permute.xlu0 0
  %29 = vperm.xlu0 %28, %v26
  %v30 = vpop.permute.xlu0 %29
  %v42 = vunpack.c.l.b16 %v16
  %v43 = vunpack.c.h.b16 %v16
  %v44 = vunpack.c.l.b16 %v17
  %v45 = vunpack.c.h.b16 %v17
  %v46 = vunpack.c.l.b16 %v18
  %v47 = vunpack.c.h.b16 %v18
  %v48 = vunpack.c.l.b16 %v19
  %v49 = vunpack.c.h.b16 %v19
  %v50 = vunpack.c.l.b16 %v20
  %v51 = vunpack.c.h.b16 %v20
  %v52 = vunpack.c.l.b16 %v21
  %v53 = vunpack.c.h.b16 %v21
  %v54 = vunpack.c.l.b16 %v22
  %v55 = vunpack.c.h.b16 %v22
  %v56 = vunpack.c.l.b16 %v23
  %v57 = vunpack.c.h.b16 %v23
  %v58 = vunpack.c.l.b16 %v24
  %v59 = vunpack.c.h.b16 %v24
  %v60 = vunpack.c.l.b16 %v25
  %v61 = vunpack.c.h.b16 %v25
  %v62 = vpack.c.b16 %v46, %v42
  %v63 = vpack.c.b16 %v47, %v43
  %v64 = vpack.c.b16 %v48, %v44
  %v65 = vpack.c.b16 %v49, %v45
  %v66 = vpack.c.b16 %v54, %v50
  %v67 = vpack.c.b16 %v55, %v51
  %v68 = vpack.c.b16 %v56, %v52
  %v69 = vpack.c.b16 %v57, %v53
  %v70 = vpack.c.b16 %v58, %v58
  %v71 = vpack.c.b16 %v59, %v59
  %v72 = vpack.c.b16 %v60, %v60
  %v73 = vpack.c.b16 %v61, %v61
  %vm82 = vcmask 293888
  %v84 = vsel %vm82, %v15, 0
  %vm86 = vcmask 1041408
  %v88 = vsel %vm86, %v70, 0
  %v91 = vsel %vm86, %v71, 0
  %v94 = vsel %vm86, %v72, 0
  %v97 = vsel %vm86, %v73, 0
  %99 = vmatpush.bf16.msra.mxu0 0
  %100 = vmatpush.bf16.msra.mxu0 0
  %101 = vmatpush.bf16.msra.mxu0 0
  %102 = vmatpush.bf16.msra.mxu0 0
  %103 = vmatpush.bf16.msra.mxu0 0
  %104 = vmatpush.bf16.msra.mxu0 %v88
  %105 = vmatpush.bf16.msra.mxu0 %v66
  %106 = vmatpush.bf16.msra.mxu0 %v62
  %107 = vmatmul.bf16.gmra.mxu0 %v84
  %v108 = vpop.f32.mrf.mxu0
  %v109 = vadd.f32 %v30, %v108
  %v110 = vpop.f32.mrf.mxu0
  %111 = vdwg.mxu0
  %112 = vmatpush.bf16.msra.mxu0 0
  %113 = vmatpush.bf16.msra.mxu0 0
  %114 = vmatpush.bf16.msra.mxu0 0
  %115 = vmatpush.bf16.msra.mxu0 0
  %116 = vmatpush.bf16.msra.mxu0 0
  %117 = vmatpush.bf16.msra.mxu0 %v91
  %118 = vmatpush.bf16.msra.mxu0 %v67
  %119 = vmatpush.bf16.msra.mxu0 %v63
  %120 = vmatmul.bf16.gmra.mxu0 %v84
  %v121 = vpop.f32.mrf.mxu0
  %v122 = vadd.f32 %v30, %v121
  %v123 = vpop.f32.mrf.mxu0
  %124 = vdwg.mxu0
  %125 = vmatpush.bf16.msra.mxu0 0
  %126 = vmatpush.bf16.msra.mxu0 0
  %127 = vmatpush.bf16.msra.mxu0 0
  %128 = vmatpush.bf16.msra.mxu0 0
  %129 = vmatpush.bf16.msra.mxu0 0
  %130 = vmatpush.bf16.msra.mxu0 %v94
  %131 = vmatpush.bf16.msra.mxu0 %v68
  %132 = vmatpush.bf16.msra.mxu0 %v64
  %133 = vmatmul.bf16.gmra.mxu0 %v84
  %v134 = vpop.f32.mrf.mxu0
  %v135 = vadd.f32 %v30, %v134
  %v136 = vpop.f32.mrf.mxu0
  %137 = vdwg.mxu0
  %138 = vmatpush.bf16.msra.mxu0 0
  %139 = vmatpush.bf16.msra.mxu0 0
  %140 = vmatpush.bf16.msra.mxu0 0
  %141 = vmatpush.bf16.msra.mxu0 0
  %142 = vmatpush.bf16.msra.mxu0 0
  %143 = vmatpush.bf16.msra.mxu0 %v97
  %144 = vmatpush.bf16.msra.mxu0 %v69
  %145 = vmatpush.bf16.msra.mxu0 %v65
  %146 = vmatmul.bf16.gmra.mxu0 %v84
  %v147 = vpop.f32.mrf.mxu0
  %v148 = vadd.f32 %v30, %v147
  %v149 = vpop.f32.mrf.mxu0
  %150 = vdwg.mxu0
  %v151 = vmax.f32 %v109, 0.0
  %v152 = vmax.f32 %v122, 0.0
  %v153 = vmax.f32 %v135, 0.0
  %v154 = vmax.f32 %v148, 0.0
  %155 = vst [vmem:[%s3] sm:$0xff] %v151
  %156 = vst [vmem:[%s3 + $0x8] sm:$0xff] %v152
  %s157 = scalar_lea.vmem %s3, 16
  %158 = vst [vmem:[%s157] sm:$0xff] %v153
  %159 = vst [vmem:[%s157 + $0x8] sm:$0xff] %v154
  // Predicated region
  $region14: #{feature_extractor_forward.1} parent=0 // pred_check
    _
  $region15: #{feature_extractor_forward.1} parent=0 // pred_check_branch
    %161 = sbr.rel (0) target = $region17
  $region16: #{feature_extractor_forward.1} parent=0 // pred_region
    _
  $region17: #{feature_extractor_forward.1} parent=0 // pred_fallthru
    _
  // Predicated region
  $region18: #{feature_extractor_forward.1} parent=0 // pred_check
    _
  $region19: #{feature_extractor_forward.1} parent=0 // pred_check_branch
    %163 = sbr.rel (0) target = $region21
  $region20: #{feature_extractor_forward.1} parent=0 // pred_region
    _
  $region21: #{feature_extractor_forward.1} parent=0 // pred_fallthru
    _

</llo_original>
